<compile_context>
chip_gen: v7x
topology: tpu7x:2x2x1
jax: 0.10.0
libtpu: 0.0.40
codegen_flags: <defaults>
</compile_context>

<pallas_src>
import jax
import jax.numpy as jnp
from jax.experimental import pallas as pl
from jax.experimental.pallas import tpu as pltpu


def _round_up(x, m):
    return ((x + m - 1) // m) * m


def _vmem_limit_bytes():
    # Per-generation VMEM budget: v7x has only 64 MiB/TC, v5e/v6e have 128 MiB.
    try:
        cap = pltpu.get_tpu_info().vmem_capacity_bytes
    except Exception:
        cap = 64 * 1024 * 1024
    return int(min(cap * 3 // 4, 100 * 1024 * 1024))


def _make_fused_kernel(use_bf16):
    """Streams mu/logvar/eps tiles, samples W in-kernel, accumulates x @ W."""

    def kernel(x_ref, wmu_ref, wlv_ref, epsw_ref, b_ref, o_ref, acc_ref):
        k = pl.program_id(2)

        @pl.when(k == 0)
        def _():
            acc_ref[...] = jnp.zeros_like(acc_ref)

        # Reparameterization on the (tk, tn) weight tile in f32 (VPU + EUP exp);
        # cast only the final sampled tile for the bf16-MXU path (v5e VPU has
        # no bf16 arithmetic, so sampling stays f32 on all generations).
        w = wmu_ref[...] + jnp.exp(0.5 * wlv_ref[...]) * epsw_ref[...]
        xv = x_ref[...]
        if use_bf16:
            w = w.astype(jnp.bfloat16)
            xv = xv.astype(jnp.bfloat16)

        # (tm, tk) @ (tk, tn) -> (tm, tn): weights are already (in, out) laid
        # out host-side, so the MXU consumes them directly (no XLU transpose).
        acc_ref[...] += jnp.dot(xv, w, preferred_element_type=jnp.float32)

        @pl.when(k == pl.num_programs(2) - 1)
        def _():
            # Single pre-sampled bias stream, added once per (i, j) tile.
            o_ref[...] = (acc_ref[...] + b_ref[...]).astype(o_ref.dtype)

    return kernel


def _make_presampled_kernel():
    """Plain tiled matmul: W already sampled (and possibly bf16) in HBM."""

    def kernel(x_ref, w_ref, b_ref, o_ref, acc_ref):
        k = pl.program_id(2)

        @pl.when(k == 0)
        def _():
            acc_ref[...] = jnp.zeros_like(acc_ref)

        w = w_ref[...]
        xv = x_ref[...].astype(w.dtype)
        acc_ref[...] += jnp.dot(xv, w, preferred_element_type=jnp.float32)

        @pl.when(k == pl.num_programs(2) - 1)
        def _():
            o_ref[...] = (acc_ref[...] + b_ref[...]).astype(o_ref.dtype)

    return kernel


def bayesian_linear_forward(x, weight_mu, weight_logvar, bias_mu, bias_logvar,
                            eps_w, eps_b, *,
                            tm_target=512, tn_target=512, tk_target=1024,
                            use_bf16_matmul=True):
    """x: (B, in); weight_*: (out, in); bias_*: (out,); eps_w: (out, in); eps_b: (out,)."""
    batch, in_features = x.shape
    out_features = weight_mu.shape[0]

    # ---------------- tile selection ----------------
    # Maximize tm first: the weight streams are re-fetched once per batch
    # tile, so tm is the only knob that divides the dominant HBM traffic.
    tm = min(tm_target, _round_up(batch, 8))
    np0 = _round_up(out_features, 128)
    tn = min(tn_target, np0)
    # v7x megacore: keep >= 2 blocks on the parallel j axis when out is large
    # enough so both TensorCores get work (also halves weight bytes per TC).
    if np0 // tn < 2 and np0 >= 256:
        tn = _round_up(np0 // 2, 128)
    tk = min(tk_target, _round_up(in_features, 128))

    bp = _round_up(batch, tm)
    np_ = _round_up(out_features, tn)
    kp = _round_up(in_features, tk)
    num_i, num_j, num_k = bp // tm, np_ // tn, kp // tk
    grid = (num_i, num_j, num_k)

    # ---------------- host-side prep ----------------
    # Zero-padding is sound: padded x columns are zero so padded K contributes
    # nothing; padded batch rows / out cols are sliced off the output.
    def prep_w(a, dtype):
        # (out, in) -> (in, out) layout, padded to (kp, np_).
        return jnp.pad(a.T.astype(dtype),
                       ((0, kp - in_features), (0, np_ - out_features)))

    xp = jnp.pad(x, ((0, bp - batch), (0, kp - in_features)))

    # Sampled bias is tiny: compute once in XLA, stream a single (1, tn) block.
    bias_s = bias_mu + jnp.exp(0.5 * bias_logvar) * eps_b
    bias_p = jnp.pad(bias_s, (0, np_ - out_features)).reshape(1, np_)

    x_spec = pl.BlockSpec((tm, tk), lambda i, j, k: (i, k))
    w_spec = pl.BlockSpec((tk, tn), lambda i, j, k: (k, j))
    b_spec = pl.BlockSpec((1, tn), lambda i, j, k: (0, j))
    o_spec = pl.BlockSpec((tm, tn), lambda i, j, k: (i, j))
    # NOTE(v5e): if DMA is still exposed after enlarging tiles, sweep
    # pipeline_mode=pl.Buffered(3) on the weight spec(s).

    # When the batch spans > 2 tm-tiles, pre-sample W once (XLA) and stream a
    # single (optionally bf16) weight array instead of re-streaming
    # mu/logvar/eps (3x f32) and re-doing the exp for every batch tile.
    presample = num_i > 2

    if presample:
        w_dtype = jnp.bfloat16 if use_bf16_matmul else jnp.float32
        w_sampled = weight_mu + jnp.exp(0.5 * weight_logvar) * eps_w  # f32 sample
        wp = prep_w(w_sampled, w_dtype)
        kernel = _make_presampled_kernel()
        in_specs = [x_spec, w_spec, b_spec]
        operands = (xp, wp, bias_p)
        w_stream_bytes = wp.dtype.itemsize * np_ * kp * num_i
        transcendentals = 0  # sampling exp done once in XLA
    else:
        wmu = prep_w(weight_mu, jnp.float32)
        wlv = prep_w(weight_logvar, jnp.float32)
        epw = prep_w(eps_w, jnp.float32)
        kernel = _make_fused_kernel(use_bf16_matmul)
        in_specs = [x_spec, w_spec, w_spec, w_spec, b_spec]
        operands = (xp, wmu, wlv, epw, bias_p)
        w_stream_bytes = 3 * 4 * np_ * kp * num_i  # re-fetched per batch tile
        transcendentals = np_ * kp * num_i          # exp redone per batch tile

    cost = pl.CostEstimate(
        flops=2 * bp * np_ * kp,
        transcendentals=int(transcendentals),
        bytes_accessed=int(4 * bp * kp * num_j      # x re-fetched per j tile
                           + w_stream_bytes         # weight stream(s)
                           + 4 * np_                # bias
                           + 4 * bp * np_),         # output
    )

    out = pl.pallas_call(
        kernel,
        out_shape=jax.ShapeDtypeStruct((bp, np_), x.dtype),
        grid_spec=pltpu.PrefetchScalarGridSpec(
            num_scalar_prefetch=0,
            grid=grid,
            in_specs=in_specs,
            out_specs=o_spec,
            scratch_shapes=[pltpu.VMEM((tm, tn), jnp.float32)],
        ),
        compiler_params=pltpu.CompilerParams(
            dimension_semantics=("parallel", "parallel", "arbitrary"),
            vmem_limit_bytes=_vmem_limit_bytes(),
        ),
        cost_estimate=cost,
    )(*operands)

    return out[:batch, :out_features]


if __name__ == "__main__":
    # Small shapes consistent with a Linear layer.
    batch, in_features, out_features = 8, 32, 16

    key = jax.random.PRNGKey(0)
    k_x, k_ew, k_eb, k_x2 = jax.random.split(key, 4)

    # Deterministic parameter init (matches the module's __init__):
    #   weight_mu = zeros, weight_logvar = -5.0, bias_mu = zeros, bias_logvar = -5.0
    weight_mu = jnp.zeros((out_features, in_features), dtype=jnp.float32)
    weight_logvar = jnp.full((out_features, in_features), -5.0, dtype=jnp.float32)
    bias_mu = jnp.zeros((out_features,), dtype=jnp.float32)
    bias_logvar = jnp.full((out_features,), -5.0, dtype=jnp.float32)

    # Inputs and the Gaussian noise for the reparameterization trick.
    x = jax.random.normal(k_x, (batch, in_features), dtype=jnp.float32)
    eps_w = jax.random.normal(k_ew, (out_features, in_features), dtype=jnp.float32)
    eps_b = jax.random.normal(k_eb, (out_features,), dtype=jnp.float32)

    # Pure-JAX reference for correctness (tolerance loosened for the bf16 MXU path).
    w_ref = weight_mu + jnp.exp(0.5 * weight_logvar) * eps_w
    b_ref = bias_mu + jnp.exp(0.5 * bias_logvar) * eps_b

    # 1) Fused path: batch fits in one tm tile -> sample W in-kernel.
    y = bayesian_linear_forward(x, weight_mu, weight_logvar, bias_mu, bias_logvar,
                                eps_w, eps_b)
    y = jax.block_until_ready(y)
    y_ref = x @ w_ref.T + b_ref
    assert y.shape == (batch, out_features)
    assert jnp.allclose(y, y_ref, atol=1e-2, rtol=1e-2), \
        float(jnp.max(jnp.abs(y - y_ref)))

    # 2) Pre-sampled two-pass path: force small tm so the batch spans >2 tiles.
    batch2 = 64
    x2 = jax.random.normal(k_x2, (batch2, in_features), dtype=jnp.float32)
    y2 = bayesian_linear_forward(x2, weight_mu, weight_logvar, bias_mu, bias_logvar,
                                 eps_w, eps_b, tm_target=8)
    y2 = jax.block_until_ready(y2)
    y2_ref = x2 @ w_ref.T + b_ref
    assert y2.shape == (batch2, out_features)
    assert jnp.allclose(y2, y2_ref, atol=1e-2, rtol=1e-2), \
        float(jnp.max(jnp.abs(y2 - y2_ref)))

    print("KERNEL_OK")
</pallas_src>

<mosaic_0001>
module attributes {stable_mosaic.version = 11 : i64} {
  func.func @kernel(%arg0: i32, %arg1: i32, %arg2: i32, %arg3: memref<8x128xf32, #tpu.memory_space<vmem>>, %arg4: memref<128x128xf32, #tpu.memory_space<vmem>>, %arg5: memref<128x128xf32, #tpu.memory_space<vmem>>, %arg6: memref<128x128xf32, #tpu.memory_space<vmem>>, %arg7: memref<1x128xf32, #tpu.memory_space<vmem>>, %arg8: memref<8x128xf32, #tpu.memory_space<vmem>>, %arg9: memref<8x128xf32, #tpu.memory_space<vmem>>) attributes {dimension_semantics = [#tpu.dimension_semantics<parallel>, #tpu.dimension_semantics<parallel>, #tpu.dimension_semantics<arbitrary>], iteration_bounds = array<i64: 1, 1, 1>, scalar_prefetch = 0 : i64, scratch_operands = 1 : i64, tpu.core_type = #tpu.core_type<tc>, window_params = [{transform_indices = @transform_0, window_bounds = array<i64: 8, 128>}, {transform_indices = @transform_1, window_bounds = array<i64: 128, 128>}, {transform_indices = @transform_2, window_bounds = array<i64: 128, 128>}, {transform_indices = @transform_3, window_bounds = array<i64: 128, 128>}, {transform_indices = @transform_4, window_bounds = array<i64: 1, 128>}, {transform_indices = @transform_5, window_bounds = array<i64: 8, 128>}]} {
    %c0_i32 = arith.constant 0 : i32
    %0 = arith.cmpi eq, %arg2, %c0_i32 : i32
    %1 = arith.extui %0 : i1 to i32
    %c0_i32_0 = arith.constant 0 : i32
    %2 = arith.cmpi ne, %1, %c0_i32_0 : i32
    scf.if %2 {
      %cst_15 = arith.constant 0.000000e+00 : f32
      %21 = vector.broadcast %cst_15 : f32 to vector<8x128xf32>
      %c0_16 = arith.constant 0 : index
      %c0_17 = arith.constant 0 : index
      %22 = vector.load %arg9[%c0_16, %c0_17] : memref<8x128xf32, #tpu.memory_space<vmem>>, vector<8x128xf32>
      tpu.vector_store %arg9[%c0_16, %c0_17], %21 {strides = array<i32>} : memref<8x128xf32, #tpu.memory_space<vmem>>, vector<8x128xf32>,
    } else {
    }
    %c0 = arith.constant 0 : index
    %c0_1 = arith.constant 0 : index
    %3 = vector.load %arg4[%c0, %c0_1] : memref<128x128xf32, #tpu.memory_space<vmem>>, vector<128x128xf32>
    %c0_2 = arith.constant 0 : index
    %c0_3 = arith.constant 0 : index
    %4 = vector.load %arg5[%c0_2, %c0_3] : memref<128x128xf32, #tpu.memory_space<vmem>>, vector<128x128xf32>
    %cst = arith.constant 5.000000e-01 : f32
    %5 = vector.broadcast %cst : f32 to vector<128x128xf32>
    %6 = arith.mulf %5, %4 : vector<128x128xf32>
    %7 = math.exp %6 : vector<128x128xf32>
    %c0_4 = arith.constant 0 : index
    %c0_5 = arith.constant 0 : index
    %8 = vector.load %arg6[%c0_4, %c0_5] : memref<128x128xf32, #tpu.memory_space<vmem>>, vector<128x128xf32>
    %9 = arith.mulf %7, %8 : vector<128x128xf32>
    %10 = arith.addf %3, %9 : vector<128x128xf32>
    %c0_6 = arith.constant 0 : index
    %c0_7 = arith.constant 0 : index
    %11 = vector.load %arg3[%c0_6, %c0_7] : memref<8x128xf32, #tpu.memory_space<vmem>>, vector<8x128xf32>
    %12 = arith.truncf %10 : vector<128x128xf32> to vector<128x128xbf16>
    %13 = arith.truncf %11 : vector<8x128xf32> to vector<8x128xbf16>
    %c0_8 = arith.constant 0 : index
    %c0_9 = arith.constant 0 : index
    %14 = vector.load %arg9[%c0_8, %c0_9] : memref<8x128xf32, #tpu.memory_space<vmem>>, vector<8x128xf32>
    %cst_10 = arith.constant dense<0.000000e+00> : vector<8x128xf32>
    %15 = tpu.matmul %13, %12, %cst_10 {dimension_numbers = #tpu.dot_dimension_numbers<[1], [0], [0], [1], [0, 0, 1, 1], [], []>} : vector<8x128xbf16>, vector<128x128xbf16>, vector<8x128xf32> -> vector<8x128xf32>
    %16 = arith.addf %14, %15 : vector<8x128xf32>
    %c0_11 = arith.constant 0 : index
    %c0_12 = arith.constant 0 : index
    %17 = vector.load %arg9[%c0_11, %c0_12] : memref<8x128xf32, #tpu.memory_space<vmem>>, vector<8x128xf32>
    tpu.vector_store %arg9[%c0_11, %c0_12], %16 {strides = array<i32>} : memref<8x128xf32, #tpu.memory_space<vmem>>, vector<8x128xf32>,
    %c0_i32_13 = arith.constant 0 : i32
    %18 = arith.cmpi eq, %arg2, %c0_i32_13 : i32
    %19 = arith.extui %18 : i1 to i32
    %c0_i32_14 = arith.constant 0 : i32
    %20 = arith.cmpi ne, %19, %c0_i32_14 : i32
    scf.if %20 {
      %c0_15 = arith.constant 0 : index
      %c0_16 = arith.constant 0 : index
      %21 = vector.load %arg9[%c0_15, %c0_16] : memref<8x128xf32, #tpu.memory_space<vmem>>, vector<8x128xf32>
      %c0_17 = arith.constant 0 : index
      %c0_18 = arith.constant 0 : index
      %22 = vector.load %arg7[%c0_17, %c0_18] : memref<1x128xf32, #tpu.memory_space<vmem>>, vector<1x128xf32>
      %23 = vector.broadcast %22 : vector<1x128xf32> to vector<8x128xf32>
      %24 = arith.addf %21, %23 : vector<8x128xf32>
      %c0_19 = arith.constant 0 : index
      %c0_20 = arith.constant 0 : index
      %25 = vector.load %arg8[%c0_19, %c0_20] : memref<8x128xf32, #tpu.memory_space<vmem>>, vector<8x128xf32>
      tpu.vector_store %arg8[%c0_19, %c0_20], %24 {strides = array<i32>} : memref<8x128xf32, #tpu.memory_space<vmem>>, vector<8x128xf32>,
    } else {
    }
    return
  }
  func.func @transform_0(%arg0: i32, %arg1: i32, %arg2: i32) -> (i32, i32) {
    %c0_i32 = arith.constant 0 : i32
    return %arg0, %arg2 : i32, i32
  }
  func.func @transform_1(%arg0: i32, %arg1: i32, %arg2: i32) -> (i32, i32) {
    %c0_i32 = arith.constant 0 : i32
    return %arg2, %arg1 : i32, i32
  }
  func.func @transform_2(%arg0: i32, %arg1: i32, %arg2: i32) -> (i32, i32) {
    %c0_i32 = arith.constant 0 : i32
    return %arg2, %arg1 : i32, i32
  }
  func.func @transform_3(%arg0: i32, %arg1: i32, %arg2: i32) -> (i32, i32) {
    %c0_i32 = arith.constant 0 : i32
    return %arg2, %arg1 : i32, i32
  }
  func.func @transform_4(%arg0: i32, %arg1: i32, %arg2: i32) -> (i32, i32) {
    %c0_i32 = arith.constant 0 : i32
    %c0_i32_0 = arith.constant 0 : i32
    return %c0_i32, %arg1 : i32, i32
  }
  func.func @transform_5(%arg0: i32, %arg1: i32, %arg2: i32) -> (i32, i32) {
    %c0_i32 = arith.constant 0 : i32
    return %arg0, %arg1 : i32, i32
  }
}

</mosaic_0001>

<llo_original>
// kernel: tpu_custom_call.1
$region0: #{tpu_custom_call.1}
  #allocation0 [shape = 'u32[]', space=smem, size = 0x4, offset = 0x4, fixed_abs, tag = 'smem constant byte address 0x4 - core index']
  #allocation1 [shape = 'u32[144,128]{1,0:T(1,128)}', space=vmem, size = 0x12000, scoped, tag = 'internal scratch']
  #allocation2 [shape = 'f32[8,128]{1,0:T(8,128)}', space=vmem, size = 0x1000, scoped, tag = 'scratch operand']
  %s0 = inlined_call_operand.hbm [shape: f32[8,128], index: 0, kind: input, shape index: {}]
  %s1 = inlined_call_operand.hbm [shape: f32[128,128], index: 1, kind: input, shape index: {}]
  %s2 = inlined_call_operand.hbm [shape: f32[128,128], index: 2, kind: input, shape index: {}]
  %s3 = inlined_call_operand.hbm [shape: f32[128,128], index: 3, kind: input, shape index: {}]
  %s4 = inlined_call_operand.vmem [shape: f32[1,128], index: 4, kind: input, shape index: {}]
  %s5 = inlined_call_operand.hbm [shape: f32[8,128], index: 5, kind: output, shape index: {}]
  %s6 = sld [smem:[#allocation0]]
  $region54: #{tpu_custom_call.1} parent=0
    _
  %s8 = ssub.s32 1, %s6
  %s9 = scalar_select 0, %s8, %s6
  $region1: #{tpu_custom_call.1} parent=0
    #allocation3 [shape = 'u8[4096]{0}', space=vmem, size = 0x1000, scoped, tag = 'input window, operand 0, single buffered']
    #allocation4 [shape = 's32[1]{0}', space=sflag, size = 0x4, scoped, tag = 'scoped memory for tpu_custom_call.1']
    #allocation5 [shape = 's32[1]{0}', space=sflag, size = 0x4, scoped, tag = 'scoped memory for tpu_custom_call.1']
    #allocation6 [shape = 'u8[65536]{0}', space=vmem, size = 0x10000, scoped, tag = 'input window, operand 1, single buffered']
    #allocation7 [shape = 's32[1]{0}', space=sflag, size = 0x4, scoped, tag = 'scoped memory for tpu_custom_call.1']
    #allocation8 [shape = 'u8[65536]{0}', space=vmem, size = 0x10000, scoped, tag = 'input window, operand 2, single buffered']
    #allocation9 [shape = 'u8[65536]{0}', space=vmem, size = 0x10000, scoped, tag = 'input window, operand 3, single buffered']
    #allocation10 [shape = 's32[1]{0}', space=sflag, size = 0x4, scoped, tag = 'scoped memory for tpu_custom_call.1']
    #allocation11 [shape = 'u8[4096]{0}', space=vmem, size = 0x1000, scoped, tag = 'output window, operand 0, single buffered']
    %10 = vsyncpa [#allocation4], 0
    %11 = vsyncpa [#allocation7], 0
    %12 = vsyncpa [#allocation10], 0
    %13 = vsyncpa [#allocation5], 0
    // Predicated region
    $region2: #{tpu_custom_call.1} parent=1 // pred_check
      _
    $region3: #{tpu_custom_call.1} parent=1 // pred_check_branch
      %15 = sbr.rel (0) target = $region5
    $region4: #{tpu_custom_call.1} parent=1 // pred_region
      %s17 = ssub.s32 128, 128
      %18 = vsyncadd [#allocation4], %s17
      %s20 = sshll.u32 [#allocation3], 4
      %s21 = int_to_ptr.vmem [resolvable:$true] %s20
      %23 = dma.hbm_to_vmem [thread:$0]  %s0, 128, %s21, [#allocation4]
    $region5: #{tpu_custom_call.1} parent=1 // pred_fallthru
      _
    // Predicated region
    $region6: #{tpu_custom_call.1} parent=1 // pred_check
      _
    $region7: #{tpu_custom_call.1} parent=1 // pred_check_branch
      %25 = sbr.rel (0) target = $region9
    $region8: #{tpu_custom_call.1} parent=1 // pred_region
      %s27 = ssub.s32 2048, 2048
      %28 = vsyncadd [#allocation7], %s27
      %s29 = sshll.u32 [#allocation6], 4
      %s30 = int_to_ptr.vmem [resolvable:$true] %s29
      %35 = dma.hbm_to_vmem [thread:$0]  %s1, 2048, %s30, [#allocation7], 128, 128, 8
    $region9: #{tpu_custom_call.1} parent=1 // pred_fallthru
      _
    // Predicated region
    $region10: #{tpu_custom_call.1} parent=1 // pred_check
      _
    $region11: #{tpu_custom_call.1} parent=1 // pred_check_branch
      %37 = sbr.rel (0) target = $region13
    $region12: #{tpu_custom_call.1} parent=1 // pred_region
      %s39 = ssub.s32 2048, 2048
      %40 = vsyncadd [#allocation7], %s39
      %s41 = sshll.u32 [#allocation8], 4
      %s42 = int_to_ptr.vmem [resolvable:$true] %s41
      %47 = dma.hbm_to_vmem [thread:$0]  %s2, 2048, %s42, [#allocation7], 128, 128, 8
    $region13: #{tpu_custom_call.1} parent=1 // pred_fallthru
      _
    // Predicated region
    $region14: #{tpu_custom_call.1} parent=1 // pred_check
      _
    $region15: #{tpu_custom_call.1} parent=1 // pred_check_branch
      %49 = sbr.rel (0) target = $region17
    $region16: #{tpu_custom_call.1} parent=1 // pred_region
      %s51 = ssub.s32 2048, 2048
      %52 = vsyncadd [#allocation10], %s51
      %s53 = sshll.u32 [#allocation9], 4
      %s54 = int_to_ptr.vmem [resolvable:$true] %s53
      %59 = dma.hbm_to_vmem [thread:$0]  %s3, 2048, %s54, [#allocation10], 128, 128, 8
    $region17: #{tpu_custom_call.1} parent=1 // pred_fallthru
      _
    // Predicated region
    $region18: #{tpu_custom_call.1} parent=1 // pred_check
      _
    $region19: #{tpu_custom_call.1} parent=1 // pred_check_branch
      %61 = sbr.rel (0) target = $region21
    $region20: #{tpu_custom_call.1} parent=1 // pred_region
      _
    $region21: #{tpu_custom_call.1} parent=1 // pred_fallthru
      _
    // Predicated region
    $region22: #{tpu_custom_call.1} parent=1 // pred_check
      _
    $region23: #{tpu_custom_call.1} parent=1 // pred_check_branch
      %63 = sbr.rel (0) target = $region25
    $region24: #{tpu_custom_call.1} parent=1 // pred_region
      %64 = dma.done [#allocation4], 128
    $region25: #{tpu_custom_call.1} parent=1 // pred_fallthru
      _
    // Predicated region
    $region26: #{tpu_custom_call.1} parent=1 // pred_check
      _
    $region27: #{tpu_custom_call.1} parent=1 // pred_check_branch
      %66 = sbr.rel (0) target = $region29
    $region28: #{tpu_custom_call.1} parent=1 // pred_region
      %67 = dma.done [#allocation7], 2048
    $region29: #{tpu_custom_call.1} parent=1 // pred_fallthru
      _
    // Predicated region
    $region30: #{tpu_custom_call.1} parent=1 // pred_check
      _
    $region31: #{tpu_custom_call.1} parent=1 // pred_check_branch
      %69 = sbr.rel (0) target = $region33
    $region32: #{tpu_custom_call.1} parent=1 // pred_region
      %70 = dma.done [#allocation7], 2048
    $region33: #{tpu_custom_call.1} parent=1 // pred_fallthru
      _
    // Predicated region
    $region34: #{tpu_custom_call.1} parent=1 // pred_check
      _
    $region35: #{tpu_custom_call.1} parent=1 // pred_check_branch
      %72 = sbr.rel (0) target = $region37
    $region36: #{tpu_custom_call.1} parent=1 // pred_region
      %73 = dma.done [#allocation10], 2048
    $region37: #{tpu_custom_call.1} parent=1 // pred_fallthru
      _
    %p75 = scmp.eq.s32.totalorder 0, 0
    // Predicated region
    $region38: #{tpu_custom_call.1} parent=1 // pred_check
      %p76 = pneg %p75
    $region39: #{tpu_custom_call.1} parent=1 // pred_check_branch
      %78 = sbr.rel (%p76) target = $region41
    $region40: #{tpu_custom_call.1} parent=1 // pred_region
      %79 = vst [vmem:[#allocation2] sm:$0xff] 0.0
    $region41: #{tpu_custom_call.1} parent=1 // pred_fallthru
      _
    %v80 = vld [vmem:[#allocation6] sm:$0xff]
    %v81 = vld [vmem:[#allocation6 + $0x8] sm:$0xff]
    %v82 = vld [vmem:[#allocation6 + $0x10] sm:$0xff]
    %v83 = vld [vmem:[#allocation6 + $0x18] sm:$0xff]
    %v84 = vld [vmem:[#allocation6 + $0x20] sm:$0xff]
    %v85 = vld [vmem:[#allocation6 + $0x28] sm:$0xff]
    %v86 = vld [vmem:[#allocation6 + $0x30] sm:$0xff]
    %v87 = vld [vmem:[#allocation6 + $0x38] sm:$0xff]
    %v88 = vld [vmem:[#allocation6 + $0x40] sm:$0xff]
    %v89 = vld [vmem:[#allocation6 + $0x48] sm:$0xff]
    %v90 = vld [vmem:[#allocation6 + $0x50] sm:$0xff]
    %v91 = vld [vmem:[#allocation6 + $0x58] sm:$0xff]
    %v92 = vld [vmem:[#allocation6 + $0x60] sm:$0xff]
    %v93 = vld [vmem:[#allocation6 + $0x68] sm:$0xff]
    %v94 = vld [vmem:[#allocation6 + $0x70] sm:$0xff]
    %v95 = vld [vmem:[#allocation6 + $0x78] sm:$0xff]
    %v96 = vld [vmem:[#allocation8] sm:$0xff]
    %v97 = vld [vmem:[#allocation8 + $0x8] sm:$0xff]
    %v98 = vld [vmem:[#allocation8 + $0x10] sm:$0xff]
    %v99 = vld [vmem:[#allocation8 + $0x18] sm:$0xff]
    %v100 = vld [vmem:[#allocation8 + $0x20] sm:$0xff]
    %v101 = vld [vmem:[#allocation8 + $0x28] sm:$0xff]
    %v102 = vld [vmem:[#allocation8 + $0x30] sm:$0xff]
    %v103 = vld [vmem:[#allocation8 + $0x38] sm:$0xff]
    %v104 = vld [vmem:[#allocation8 + $0x40] sm:$0xff]
    %v105 = vld [vmem:[#allocation8 + $0x48] sm:$0xff]
    %v106 = vld [vmem:[#allocation8 + $0x50] sm:$0xff]
    %v107 = vld [vmem:[#allocation8 + $0x58] sm:$0xff]
    %v108 = vld [vmem:[#allocation8 + $0x60] sm:$0xff]
    %v109 = vld [vmem:[#allocation8 + $0x68] sm:$0xff]
    %v110 = vld [vmem:[#allocation8 + $0x70] sm:$0xff]
    %v111 = vld [vmem:[#allocation8 + $0x78] sm:$0xff]
    %v112 = vmul.f32 %v96, 0.5
    %v113 = vmul.f32 %v97, 0.5
    %v114 = vmul.f32 %v98, 0.5
    %v115 = vmul.f32 %v99, 0.5
    %v116 = vmul.f32 %v100, 0.5
    %v117 = vmul.f32 %v101, 0.5
    %v118 = vmul.f32 %v102, 0.5
    %v119 = vmul.f32 %v103, 0.5
    %v120 = vmul.f32 %v104, 0.5
    %v121 = vmul.f32 %v105, 0.5
    %v122 = vmul.f32 %v106, 0.5
    %v123 = vmul.f32 %v107, 0.5
    %v124 = vmul.f32 %v108, 0.5
    %v125 = vmul.f32 %v109, 0.5
    %v126 = vmul.f32 %v110, 0.5
    %v127 = vmul.f32 %v111, 0.5
    %v128 = vmul.f32 %v112, 1.442695
    %v129 = vpow.pop %v128
    %v130 = vmul.f32 %v113, 1.442695
    %v131 = vpow.pop %v130
    %v132 = vmul.f32 %v114, 1.442695
    %v133 = vpow.pop %v132
    %v134 = vmul.f32 %v115, 1.442695
    %v135 = vpow.pop %v134
    %v136 = vmul.f32 %v116, 1.442695
    %v137 = vpow.pop %v136
    %v138 = vmul.f32 %v117, 1.442695
    %v139 = vpow.pop %v138
    %v140 = vmul.f32 %v118, 1.442695
    %v141 = vpow.pop %v140
    %v142 = vmul.f32 %v119, 1.442695
    %v143 = vpow.pop %v142
    %v144 = vmul.f32 %v120, 1.442695
    %v145 = vpow.pop %v144
    %v146 = vmul.f32 %v121, 1.442695
    %v147 = vpow.pop %v146
    %v148 = vmul.f32 %v122, 1.442695
    %v149 = vpow.pop %v148
    %v150 = vmul.f32 %v123, 1.442695
    %v151 = vpow.pop %v150
    %v152 = vmul.f32 %v124, 1.442695
    %v153 = vpow.pop %v152
    %v154 = vmul.f32 %v125, 1.442695
    %v155 = vpow.pop %v154
    %v156 = vmul.f32 %v126, 1.442695
    %v157 = vpow.pop %v156
    %v158 = vmul.f32 %v127, 1.442695
    %v159 = vpow.pop %v158
    %v160 = vld [vmem:[#allocation9] sm:$0xff]
    %v161 = vld [vmem:[#allocation9 + $0x8] sm:$0xff]
    %v162 = vld [vmem:[#allocation9 + $0x10] sm:$0xff]
    %v163 = vld [vmem:[#allocation9 + $0x18] sm:$0xff]
    %v164 = vld [vmem:[#allocation9 + $0x20] sm:$0xff]
    %v165 = vld [vmem:[#allocation9 + $0x28] sm:$0xff]
    %v166 = vld [vmem:[#allocation9 + $0x30] sm:$0xff]
    %v167 = vld [vmem:[#allocation9 + $0x38] sm:$0xff]
    %v168 = vld [vmem:[#allocation9 + $0x40] sm:$0xff]
    %v169 = vld [vmem:[#allocation9 + $0x48] sm:$0xff]
    %v170 = vld [vmem:[#allocation9 + $0x50] sm:$0xff]
    %v171 = vld [vmem:[#allocation9 + $0x58] sm:$0xff]
    %v172 = vld [vmem:[#allocation9 + $0x60] sm:$0xff]
    %v173 = vld [vmem:[#allocation9 + $0x68] sm:$0xff]
    %v174 = vld [vmem:[#allocation9 + $0x70] sm:$0xff]
    %v175 = vld [vmem:[#allocation9 + $0x78] sm:$0xff]
    %v176 = vmul.f32 %v129, %v160
    %v177 = vmul.f32 %v131, %v161
    %v178 = vmul.f32 %v133, %v162
    %v179 = vmul.f32 %v135, %v163
    %v180 = vmul.f32 %v137, %v164
    %v181 = vmul.f32 %v139, %v165
    %v182 = vmul.f32 %v141, %v166
    %v183 = vmul.f32 %v143, %v167
    %v184 = vmul.f32 %v145, %v168
    %v185 = vmul.f32 %v147, %v169
    %v186 = vmul.f32 %v149, %v170
    %v187 = vmul.f32 %v151, %v171
    %v188 = vmul.f32 %v153, %v172
    %v189 = vmul.f32 %v155, %v173
    %v190 = vmul.f32 %v157, %v174
    %v191 = vmul.f32 %v159, %v175
    %v192 = vadd.f32 %v80, %v176
    %v193 = vadd.f32 %v81, %v177
    %v194 = vadd.f32 %v82, %v178
    %v195 = vadd.f32 %v83, %v179
    %v196 = vadd.f32 %v84, %v180
    %v197 = vadd.f32 %v85, %v181
    %v198 = vadd.f32 %v86, %v182
    %v199 = vadd.f32 %v87, %v183
    %v200 = vadd.f32 %v88, %v184
    %v201 = vadd.f32 %v89, %v185
    %v202 = vadd.f32 %v90, %v186
    %v203 = vadd.f32 %v91, %v187
    %v204 = vadd.f32 %v92, %v188
    %v205 = vadd.f32 %v93, %v189
    %v206 = vadd.f32 %v94, %v190
    %v207 = vadd.f32 %v95, %v191
    %v208 = vld [vmem:[#allocation3] sm:$0xff]
    %v209 = vpack.c.bf16 %v193, %v192
    %v210 = vpack.c.bf16 %v195, %v194
    %v211 = vpack.c.bf16 %v197, %v196
    %v212 = vpack.c.bf16 %v199, %v198
    %v213 = vpack.c.bf16 %v201, %v200
    %v214 = vpack.c.bf16 %v203, %v202
    %v215 = vpack.c.bf16 %v205, %v204
    %v216 = vpack.c.bf16 %v207, %v206
    %v217 = vpack.c.bf16 %v208, %v208
    %v218 = vld [vmem:[#allocation2] sm:$0xff]
    %219 = vmatprep.subr.bf16.mxu0 0
    %220 = vmatpush1.bf16.msra.mxu0 %v209
    %221 = vmatprep.subr.bf16.mxu0 0
    %222 = vmatpush1.bf16.msra.mxu0 %v210
    %223 = vmatprep.subr.bf16.mxu0 0
    %224 = vmatpush1.bf16.msra.mxu0 %v211
    %225 = vmatprep.subr.bf16.mxu0 0
    %226 = vmatpush1.bf16.msra.mxu0 %v212
    %227 = vmatprep.subr.bf16.mxu0 0
    %228 = vmatpush1.bf16.msra.mxu0 %v213
    %229 = vmatprep.subr.bf16.mxu0 0
    %230 = vmatpush1.bf16.msra.mxu0 %v214
    %231 = vmatprep.subr.bf16.mxu0 0
    %232 = vmatpush1.bf16.msra.mxu0 %v215
    %233 = vmatprep.subr.bf16.mxu0 0
    %234 = vmatpush1.bf16.msra.mxu0 %v216
    %235 = vmatprep.subr.bf16.mxu0 0
    %236 = vmatpush1.bf16.msra.mxu0 0
    %237 = vmatprep.subr.bf16.mxu0 0
    %238 = vmatpush1.bf16.msra.mxu0 0
    %239 = vmatprep.subr.bf16.mxu0 0
    %240 = vmatpush1.bf16.msra.mxu0 0
    %241 = vmatprep.subr.bf16.mxu0 0
    %242 = vmatpush1.bf16.msra.mxu0 0
    %243 = vmatprep.subr.bf16.mxu0 0
    %244 = vmatpush1.bf16.msra.mxu0 0
    %245 = vmatprep.subr.bf16.mxu0 0
    %246 = vmatpush1.bf16.msra.mxu0 0
    %247 = vmatprep.subr.bf16.mxu0 0
    %248 = vmatpush1.bf16.msra.mxu0 0
    %249 = vmatprep.subr.bf16.mxu0 0
    %250 = vmatpush1.bf16.msra.mxu0 0
    %251 = vmatprep.mubr.bf16.mxu0 0
    %252 = vmatmul.mubr.bf16.gmra.mrb[0].mxu0 %v217
    %v253 = vpop.f32.mrb[0].mxu0
    %v254 = vadd.f32 0.0, %v253
    %v255 = vpop.f32.mrb[0].mxu0
    %v256 = vpop.f32.mrb[0].mxu0
    %v257 = vpop.f32.mrb[0].mxu0
    %258 = vdwg.mxu0
    %v259 = vadd.f32 %v218, %v254
    %260 = vst [vmem:[#allocation2] sm:$0xff] %v259
    // Predicated region
    $region42: #{tpu_custom_call.1} parent=1 // pred_check
      %p261 = pneg %p75
    $region43: #{tpu_custom_call.1} parent=1 // pred_check_branch
      %263 = sbr.rel (%p261) target = $region45
    $region44: #{tpu_custom_call.1} parent=1 // pred_region
      %v264 = vld [vmem:[#allocation2] sm:$0xff]
      %v265 = vld [vmem:[%s4] sm:$0x1]
      %v267 = vlaneseq
      %v268 = vshrl.u32 %v267, 7
      %v269 = vsub.s32 0, %v268
      %v270 = vrot.slane %v265, %v269
      %v272 = vadd.f32 %v264, %v270
      %273 = vst [vmem:[#allocation11] sm:$0xff] %v272
    $region45: #{tpu_custom_call.1} parent=1 // pred_fallthru
      _
    // Predicated region
    $region46: #{tpu_custom_call.1} parent=1 // pred_check
      _
    $region47: #{tpu_custom_call.1} parent=1 // pred_check_branch
      %275 = sbr.rel (0) target = $region49
    $region48: #{tpu_custom_call.1} parent=1 // pred_region
      %s277 = ssub.s32 128, 128
      %278 = vsyncadd [#allocation5], %s277
      %s280 = sshll.u32 [#allocation11], 4
      %s281 = int_to_ptr.vmem [resolvable:$true] %s280
      %283 = dma.vmem_to_hbm [thread:$0]  %s281, 128, %s5, [#allocation5]
    $region49: #{tpu_custom_call.1} parent=1 // pred_fallthru
      _
    // Predicated region
    $region50: #{tpu_custom_call.1} parent=1 // pred_check
      _
    $region51: #{tpu_custom_call.1} parent=1 // pred_check_branch
      %285 = sbr.rel (0) target = $region53
    $region52: #{tpu_custom_call.1} parent=1 // pred_region
      %286 = dma.done [#allocation5], 128
    $region53: #{tpu_custom_call.1} parent=1 // pred_fallthru
      _
    %287 = vsyncpa [#allocation4], 1
    %288 = vsyncpa [#allocation7], 1
    %289 = vsyncpa [#allocation10], 1
    %290 = vsyncpa [#allocation5], 1

</llo_original>
